<compile_context>
chip_gen: v7x
topology: tpu7x:2x2x1
jax: 0.10.0
libtpu: 0.0.40
codegen_flags: <defaults>
</compile_context>

<pallas_src>
import functools

import jax
import jax.numpy as jnp
from jax import lax
from jax.experimental import pallas as pl
from jax.experimental.pallas import tpu as pltpu

# ---- constants from the PyTorch module ----
NUM_CLASSES = 7
WEIGHT_F = 2.0
WEIGHT_D = 0.5
WEIGHT_J = 1.0
FOCAL_ALPHA = 0.5
FOCAL_GAMMA = 2.0
DICE_SMOOTH = 1.0

# Working-set budget used to auto-size the pixel tile.  Conservative: leaves
# headroom for Mosaic's own value temporaries and double-buffered inputs on
# every generation, including v7x's 64 MiB-per-TensorCore VMEM.
_TILE_VMEM_BUDGET = 20 * 1024 * 1024


def _round_up(x, m):
    return (x + m - 1) // m * m


@functools.lru_cache(maxsize=1)
def _num_tensorcores():
    """Best-effort TensorCores-per-chip (v7x=2, v5e/v6e=1). Never raises."""
    try:
        info = pltpu.get_tpu_info()
        for name in ("num_cores", "cores_per_chip", "num_tensorcores",
                     "tensor_cores_per_chip"):
            v = getattr(info, name, None)
            if isinstance(v, int) and 0 < v <= 8:
                return v
    except Exception:
        pass
    try:
        v = getattr(jax.devices()[0], "num_cores", None)
        if isinstance(v, int) and 0 < v <= 8:
            return v
    except Exception:
        pass
    return 1


def _bytes_per_pixel(n, c, logits_itemsize):
    """Rough per-lane VMEM cost: double-buffered inputs + live f32 temporaries."""
    nc_pad = max(8, _round_up(n * c, 8))        # sublane padding of the N*C rows
    logits = 2 * nc_pad * logits_itemsize       # double-buffered logits block
    labels = 2 * 8 * 4                          # double-buffered int32 labels (padded)
    temps = 10 * nc_pad * 4                     # conservative live f32 value temps
    return logits + labels + temps


def _focal_dice_kernel(logits_ref, labels_ref, num_ref, den_ref, ce_ref,
                       *, p_total, needs_mask):
    """One grid step: [N, C, TP] logits + [N, TP] labels -> running partial sums."""
    t = pl.program_id(1)

    @pl.when(t == 0)
    def _init():
        num_ref[...] = jnp.zeros_like(num_ref)
        den_ref[...] = jnp.zeros_like(den_ref)
        ce_ref[...] = jnp.zeros_like(ce_ref)

    x = logits_ref[...].astype(jnp.float32)          # (N, C, TP), f32 math in-kernel
    lab = labels_ref[...]                            # (N, TP) int32

    # Per-pixel softmax over the class (sublane) axis.
    m = jnp.max(x, axis=1, keepdims=True)            # (N, 1, TP)
    xm = x - m
    ex = jnp.exp(xm)
    se = jnp.sum(ex, axis=1, keepdims=True)          # (N, 1, TP)
    inv_se = pl.reciprocal(se, approx=True)          # EUP slot; error << test rtol
    sm = ex * inv_se                                 # softmax probabilities

    # One-hot targets from an iota over the class axis.  (Labels are assumed in
    # [0, C) as in the PyTorch module; there is no ignore_index.)
    class_ids = lax.broadcasted_iota(jnp.int32, x.shape, 1)
    onehot = (class_ids == lab[:, None, :]).astype(jnp.float32)

    # Per-pixel CE without materializing a full log-softmax tile:
    #   -log_softmax[true] = log(se) - (x[true] - m)
    ce_pix = jnp.log(se) - jnp.sum(onehot * xm, axis=1, keepdims=True)   # (N,1,TP)

    num_t = onehot * sm                              # dice numerator terms
    den_t = sm * sm + onehot                         # dice denominator terms

    if needs_mask:
        # Ragged tail handled in-kernel (no wrapper-side pad).  Out-of-range
        # block contents are undefined, so neutralize with jnp.where (multiply
        # would propagate NaN/Inf).  `base` uses the *logical* block position;
        # fully out-of-range logical blocks (clamped index_map) mask to zero.
        n, _, tp = x.shape
        base = (pl.program_id(0) * pl.num_programs(1) + t) * tp
        pix = base + lax.broadcasted_iota(jnp.int32, x.shape, 2)
        valid = pix < p_total
        num_t = jnp.where(valid, num_t, 0.0)
        den_t = jnp.where(valid, den_t, 0.0)
        ce_pix = jnp.where(valid[:, :1, :], ce_pix, 0.0)

    # Fold each step straight down to (N, C) / scalar partials; the output
    # blocks stay VMEM-resident across the 't' axis, so this is the accumulator
    # (no tile_p-wide scratch, no full-tile read-modify-write).
    # TODO(synk): optionally route the class-axis sums through the idle MXU
    # (ones(1,C) contraction) on v6e/v7x if the XLU path ever binds.
    num_ref[...] += jnp.sum(num_t, axis=-1)[None, :, :]
    den_ref[...] += jnp.sum(den_t, axis=-1)[None, :, :]
    ce_ref[...] += jnp.sum(ce_pix).reshape(1, 1, 1)


def focal_loss_with_dice(y_pred, y_true, *, tile_p=None, n_split=None,
                         compute_dtype=None):
    """y_pred: [N, C, H, W] logits, y_true: [N, H, W] (or [N, 1, H, W]) int labels."""
    if y_true.ndim == y_pred.ndim:           # mirror the torch module's squeeze(1)
        y_true = jnp.squeeze(y_true, axis=1)
    N, C, H, W = y_pred.shape
    assert C == NUM_CLASSES, "DiceLoss hard-codes 7 classes via make_one_hot"
    P = H * W

    # Optional down-cast for bandwidth-bound chips (e.g. bf16 on v5e); in-kernel
    # math stays f32 regardless.
    if compute_dtype is not None:
        y_pred = y_pred.astype(compute_dtype)
    itemsize = y_pred.dtype.itemsize

    if n_split is None:
        n_split = _num_tensorcores()          # pixel-range split across TCs (v7x)
    n_split = max(1, int(n_split))

    if tile_p is None:
        # Auto-size the pixel tile against the VMEM budget: big tiles amortize
        # the ~0.35 us/step pipeline overhead (the old 4096 default was
        # overhead-bound).
        tile_p = _TILE_VMEM_BUDGET // _bytes_per_pixel(N, C, itemsize)
    tile_p = int(max(128, min((int(tile_p) // 128) * 128,
                              _round_up(pl.cdiv(P, n_split), 128))))

    n_blocks = pl.cdiv(P, tile_p)
    n_split = max(1, min(n_split, n_blocks))
    steps = pl.cdiv(n_blocks, n_split)
    needs_mask = (n_split * steps * tile_p) != P
    last_block = n_blocks - 1

    # Pure reshapes — no jnp.pad, so no extra HBM pass over the logits.
    logits = y_pred.reshape(N, C, P)
    labels = y_true.reshape(N, P).astype(jnp.int32)

    kernel = functools.partial(_focal_dice_kernel, p_total=P, needs_mask=needs_mask)

    # Logical block (s, t) -> pixel block s*steps + t, clamped so DMAs never
    # start past the end of the array; fully out-of-range logical blocks re-read
    # the last block and are zeroed by the in-kernel mask.
    def pix_map3(s, t):
        return (0, 0, jnp.minimum(s * steps + t, last_block))

    def pix_map2(s, t):
        return (0, jnp.minimum(s * steps + t, last_block))

    est_bytes = _bytes_per_pixel(N, C, itemsize) * tile_p
    vmem_limit = int(min(40 * 1024 * 1024,
                         max(32 * 1024 * 1024, int(1.25 * est_bytes))))

    num_out, den_out, ce_out = pl.pallas_call(
        kernel,
        out_shape=(
            jax.ShapeDtypeStruct((n_split, N, C), jnp.float32),
            jax.ShapeDtypeStruct((n_split, N, C), jnp.float32),
            jax.ShapeDtypeStruct((n_split, 1, 1), jnp.float32),
        ),
        grid_spec=pltpu.PrefetchScalarGridSpec(
            num_scalar_prefetch=0,
            grid=(n_split, steps),
            in_specs=[
                pl.BlockSpec((N, C, tile_p), pix_map3),
                pl.BlockSpec((N, tile_p), pix_map2),
            ],
            out_specs=[
                pl.BlockSpec((1, N, C), lambda s, t: (s, 0, 0)),
                pl.BlockSpec((1, N, C), lambda s, t: (s, 0, 0)),
                pl.BlockSpec((1, 1, 1), lambda s, t: (s, 0, 0)),
            ],
        ),
        compiler_params=pltpu.CompilerParams(
            dimension_semantics=("parallel", "arbitrary"),
            vmem_limit_bytes=vmem_limit),
    )(logits, labels)

    # Tiny scalar finalize in JAX (also merges per-core partials on v7x).
    ce = jnp.sum(ce_out) / jnp.float32(N * P)         # mean CE over N*P pixels
    logpt = -ce
    pt = jnp.exp(logpt)
    fl = -((1.0 - pt) ** FOCAL_GAMMA) * FOCAL_ALPHA * logpt

    num = jnp.sum(num_out, axis=0) + DICE_SMOOTH      # (N, C)
    den = jnp.sum(den_out, axis=0) + DICE_SMOOTH
    dice = 1.0 - num / den
    dl = jnp.sum(dice) / jnp.float32(N * C)           # mean over N, sum over C / C

    return WEIGHT_J * (WEIGHT_F * fl + WEIGHT_D * dl)


def focal_loss_with_dice_ref(y_pred, y_true):
    """Pure-JAX reference mirroring the PyTorch forward."""
    N, C, H, W = y_pred.shape
    logits = y_pred.reshape(N, C, H * W).astype(jnp.float32)
    labels = y_true.reshape(N, H * W)
    logsm = jax.nn.log_softmax(logits, axis=1)
    sm = jax.nn.softmax(logits, axis=1)
    onehot = jax.nn.one_hot(labels, C, axis=1, dtype=jnp.float32)
    ce = -jnp.mean(jnp.sum(onehot * logsm, axis=1))
    logpt = -ce
    pt = jnp.exp(logpt)
    fl = -((1.0 - pt) ** FOCAL_GAMMA) * FOCAL_ALPHA * logpt
    num = jnp.sum(sm * onehot, axis=2) + DICE_SMOOTH
    den = jnp.sum(sm * sm + onehot, axis=2) + DICE_SMOOTH
    dice = 1.0 - num / den
    dl = jnp.sum(jnp.mean(dice, axis=0)) / C
    return WEIGHT_J * (WEIGHT_F * fl + WEIGHT_D * dl)


if __name__ == "__main__":
    key = jax.random.PRNGKey(0)
    k1, k2 = jax.random.split(key)
    N, C, H, W = 2, NUM_CLASSES, 16, 16
    y_pred = jax.random.normal(k1, (N, C, H, W), dtype=jnp.float32)
    y_true = jax.random.randint(k2, (N, H, W), 0, C, dtype=jnp.int32)

    loss = focal_loss_with_dice(y_pred, y_true)
    jax.block_until_ready(loss)
    ref = focal_loss_with_dice_ref(y_pred, y_true)
    assert jnp.allclose(loss, ref, rtol=4e-3, atol=1e-4), (loss, ref)

    # Ragged tail: partial last block handled in-kernel (no wrapper-side pad).
    y_pred2 = jax.random.normal(k1, (N, C, 20, 20), dtype=jnp.float32)
    y_true2 = jax.random.randint(k2, (N, 20, 20), 0, C, dtype=jnp.int32)
    loss2 = focal_loss_with_dice(y_pred2, y_true2, tile_p=128, n_split=2)
    jax.block_until_ready(loss2)
    ref2 = focal_loss_with_dice_ref(y_pred2, y_true2)
    assert jnp.allclose(loss2, ref2, rtol=4e-3, atol=1e-4), (loss2, ref2)

    # Split grid where a logical block is fully out of range (exercises the
    # clamped index_map + all-false mask path).
    y_pred3 = jax.random.normal(k1, (N, C, 15, 20), dtype=jnp.float32)
    y_true3 = jax.random.randint(k2, (N, 15, 20), 0, C, dtype=jnp.int32)
    loss3 = focal_loss_with_dice(y_pred3, y_true3, tile_p=128, n_split=2)
    jax.block_until_ready(loss3)
    ref3 = focal_loss_with_dice_ref(y_pred3, y_true3)
    assert jnp.allclose(loss3, ref3, rtol=4e-3, atol=1e-4), (loss3, ref3)

    print("KERNEL_OK")
</pallas_src>

<mosaic_0001>
module attributes {stable_mosaic.version = 11 : i64} {
  func.func @_focal_dice_kernel(%arg0: i32, %arg1: i32, %arg2: memref<2x7x256xf32, #tpu.memory_space<vmem>>, %arg3: memref<2x256xi32, #tpu.memory_space<vmem>>, %arg4: memref<1x2x7xf32, #tpu.memory_space<vmem>>, %arg5: memref<1x2x7xf32, #tpu.memory_space<vmem>>, %arg6: memref<1x1x1xf32, #tpu.memory_space<vmem>>) attributes {dimension_semantics = [#tpu.dimension_semantics<parallel>, #tpu.dimension_semantics<arbitrary>], iteration_bounds = array<i64: 1, 1>, scalar_prefetch = 0 : i64, scratch_operands = 0 : i64, tpu.core_type = #tpu.core_type<tc>, window_params = [{transform_indices = @transform_0, window_bounds = array<i64: 2, 7, 256>}, {transform_indices = @transform_1, window_bounds = array<i64: 2, 256>}, {transform_indices = @transform_2, window_bounds = array<i64: 1, 2, 7>}, {transform_indices = @transform_3, window_bounds = array<i64: 1, 2, 7>}, {transform_indices = @transform_4, window_bounds = array<i64: 1, 1, 1>}]} {
    %c0_i32 = arith.constant 0 : i32
    %0 = arith.cmpi eq, %arg1, %c0_i32 : i32
    %1 = arith.extui %0 : i1 to i32
    %c0_i32_0 = arith.constant 0 : i32
    %2 = arith.cmpi ne, %1, %c0_i32_0 : i32
    scf.if %2 {
      %cst_28 = arith.constant 0.000000e+00 : f32
      %47 = vector.broadcast %cst_28 : f32 to vector<1x2x7xf32>
      %c0_29 = arith.constant 0 : index
      %c0_30 = arith.constant 0 : index
      %c0_31 = arith.constant 0 : index
      %48 = vector.load %arg4[%c0_29, %c0_30, %c0_31] : memref<1x2x7xf32, #tpu.memory_space<vmem>>, vector<1x2x7xf32>
      tpu.vector_store %arg4[%c0_29, %c0_30, %c0_31], %47 {strides = array<i32>} : memref<1x2x7xf32, #tpu.memory_space<vmem>>, vector<1x2x7xf32>,
      %cst_32 = arith.constant 0.000000e+00 : f32
      %49 = vector.broadcast %cst_32 : f32 to vector<1x2x7xf32>
      %c0_33 = arith.constant 0 : index
      %c0_34 = arith.constant 0 : index
      %c0_35 = arith.constant 0 : index
      %50 = vector.load %arg5[%c0_33, %c0_34, %c0_35] : memref<1x2x7xf32, #tpu.memory_space<vmem>>, vector<1x2x7xf32>
      tpu.vector_store %arg5[%c0_33, %c0_34, %c0_35], %49 {strides = array<i32>} : memref<1x2x7xf32, #tpu.memory_space<vmem>>, vector<1x2x7xf32>,
      %cst_36 = arith.constant 0.000000e+00 : f32
      %51 = vector.broadcast %cst_36 : f32 to vector<1x1x1xf32>
      %c0_37 = arith.constant 0 : index
      %c0_38 = arith.constant 0 : index
      %c0_39 = arith.constant 0 : index
      %52 = vector.load %arg6[%c0_37, %c0_38, %c0_39] : memref<1x1x1xf32, #tpu.memory_space<vmem>>, vector<1x1x1xf32>
      tpu.vector_store %arg6[%c0_37, %c0_38, %c0_39], %51 {strides = array<i32>} : memref<1x1x1xf32, #tpu.memory_space<vmem>>, vector<1x1x1xf32>,
    } else {
    }
    %c0 = arith.constant 0 : index
    %c0_1 = arith.constant 0 : index
    %c0_2 = arith.constant 0 : index
    %3 = vector.load %arg2[%c0, %c0_1, %c0_2] : memref<2x7x256xf32, #tpu.memory_space<vmem>>, vector<2x7x256xf32>
    %c0_3 = arith.constant 0 : index
    %c0_4 = arith.constant 0 : index
    %4 = vector.load %arg3[%c0_3, %c0_4] : memref<2x256xi32, #tpu.memory_space<vmem>>, vector<2x256xi32>
    %cst = arith.constant dense<0xFF800000> : vector<2x256xf32>
    %5 = vector.multi_reduction <maximumf>, %3, %cst [1] : vector<2x7x256xf32> to vector<2x256xf32>
    %6 = vector.shape_cast %5 : vector<2x256xf32> to vector<2x1x256xf32>
    %7 = vector.broadcast %6 : vector<2x1x256xf32> to vector<2x7x256xf32>
    %8 = arith.subf %3, %7 : vector<2x7x256xf32>
    %9 = math.exp %8 : vector<2x7x256xf32>
    %cst_5 = arith.constant dense<0.000000e+00> : vector<2x256xf32>
    %10 = vector.multi_reduction <add>, %9, %cst_5 [1] : vector<2x7x256xf32> to vector<2x256xf32>
    %11 = vector.shape_cast %10 : vector<2x256xf32> to vector<2x1x256xf32>
    %12 = tpu.reciprocal %11 {approx = true} : vector<2x1x256xf32> -> vector<2x1x256xf32>
    %13 = vector.broadcast %12 : vector<2x1x256xf32> to vector<2x7x256xf32>
    %14 = arith.mulf %9, %13 : vector<2x7x256xf32>
    %15 = tpu.iota {dimensions = array<i32: 1>} : vector<2x7x256xi32>
    %16 = vector.shape_cast %4 : vector<2x256xi32> to vector<2x1x256xi32>
    %17 = vector.broadcast %16 : vector<2x1x256xi32> to vector<2x7x256xi32>
    %18 = arith.cmpi eq, %15, %17 : vector<2x7x256xi32>
    %19 = arith.extui %18 : vector<2x7x256xi1> to vector<2x7x256xi32>
    %20 = arith.sitofp %19 : vector<2x7x256xi32> to vector<2x7x256xf32>
    %21 = math.log %11 : vector<2x1x256xf32>
    %22 = arith.mulf %20, %8 : vector<2x7x256xf32>
    %cst_6 = arith.constant dense<0.000000e+00> : vector<2x256xf32>
    %23 = vector.multi_reduction <add>, %22, %cst_6 [1] : vector<2x7x256xf32> to vector<2x256xf32>
    %24 = vector.shape_cast %23 : vector<2x256xf32> to vector<2x1x256xf32>
    %25 = arith.subf %21, %24 : vector<2x1x256xf32>
    %26 = arith.mulf %20, %14 : vector<2x7x256xf32>
    %27 = arith.mulf %14, %14 : vector<2x7x256xf32>
    %28 = arith.addf %27, %20 : vector<2x7x256xf32>
    %c0_7 = arith.constant 0 : index
    %c0_8 = arith.constant 0 : index
    %c0_9 = arith.constant 0 : index
    %29 = vector.load %arg4[%c0_7, %c0_8, %c0_9] : memref<1x2x7xf32, #tpu.memory_space<vmem>>, vector<1x2x7xf32>
    %cst_10 = arith.constant dense<0.000000e+00> : vector<2x7xf32>
    %30 = vector.multi_reduction <add>, %26, %cst_10 [2] : vector<2x7x256xf32> to vector<2x7xf32>
    %31 = vector.shape_cast %30 : vector<2x7xf32> to vector<1x2x7xf32>
    %32 = arith.addf %29, %31 : vector<1x2x7xf32>
    %c0_11 = arith.constant 0 : index
    %c0_12 = arith.constant 0 : index
    %c0_13 = arith.constant 0 : index
    %33 = vector.load %arg4[%c0_11, %c0_12, %c0_13] : memref<1x2x7xf32, #tpu.memory_space<vmem>>, vector<1x2x7xf32>
    tpu.vector_store %arg4[%c0_11, %c0_12, %c0_13], %32 {strides = array<i32>} : memref<1x2x7xf32, #tpu.memory_space<vmem>>, vector<1x2x7xf32>,
    %c0_14 = arith.constant 0 : index
    %c0_15 = arith.constant 0 : index
    %c0_16 = arith.constant 0 : index
    %34 = vector.load %arg5[%c0_14, %c0_15, %c0_16] : memref<1x2x7xf32, #tpu.memory_space<vmem>>, vector<1x2x7xf32>
    %cst_17 = arith.constant dense<0.000000e+00> : vector<2x7xf32>
    %35 = vector.multi_reduction <add>, %28, %cst_17 [2] : vector<2x7x256xf32> to vector<2x7xf32>
    %36 = vector.shape_cast %35 : vector<2x7xf32> to vector<1x2x7xf32>
    %37 = arith.addf %34, %36 : vector<1x2x7xf32>
    %c0_18 = arith.constant 0 : index
    %c0_19 = arith.constant 0 : index
    %c0_20 = arith.constant 0 : index
    %38 = vector.load %arg5[%c0_18, %c0_19, %c0_20] : memref<1x2x7xf32, #tpu.memory_space<vmem>>, vector<1x2x7xf32>
    tpu.vector_store %arg5[%c0_18, %c0_19, %c0_20], %37 {strides = array<i32>} : memref<1x2x7xf32, #tpu.memory_space<vmem>>, vector<1x2x7xf32>,
    %c0_21 = arith.constant 0 : index
    %c0_22 = arith.constant 0 : index
    %c0_23 = arith.constant 0 : index
    %39 = vector.load %arg6[%c0_21, %c0_22, %c0_23] : memref<1x1x1xf32, #tpu.memory_space<vmem>>, vector<1x1x1xf32>
    %40 = vector.shape_cast %25 : vector<2x1x256xf32> to vector<1x2x1x256xf32>
    %cst_24 = arith.constant dense<0.000000e+00> : vector<1xf32>
    %41 = vector.multi_reduction <add>, %40, %cst_24 [1, 2, 3] : vector<1x2x1x256xf32> to vector<1xf32>
    %42 = vector.shape_cast %41 : vector<1xf32> to vector<1x1x1x1xf32>
    %43 = vector.extract %42[0, 0, 0, 0] : f32 from vector<1x1x1x1xf32>
    %44 = vector.broadcast %43 : f32 to vector<1x1x1xf32>
    %45 = arith.addf %39, %44 : vector<1x1x1xf32>
    %c0_25 = arith.constant 0 : index
    %c0_26 = arith.constant 0 : index
    %c0_27 = arith.constant 0 : index
    %46 = vector.load %arg6[%c0_25, %c0_26, %c0_27] : memref<1x1x1xf32, #tpu.memory_space<vmem>>, vector<1x1x1xf32>
    tpu.vector_store %arg6[%c0_25, %c0_26, %c0_27], %45 {strides = array<i32>} : memref<1x1x1xf32, #tpu.memory_space<vmem>>, vector<1x1x1xf32>,
    return
  }
  func.func @transform_0(%arg0: i32, %arg1: i32) -> (i32, i32, i32) {
    %c1_i32 = arith.constant 1 : i32
    %0 = arith.muli %arg0, %c1_i32 : i32
    %1 = arith.addi %0, %arg1 : i32
    %c0_i32 = arith.constant 0 : i32
    %2 = arith.minsi %1, %c0_i32 : i32
    %c0_i32_0 = arith.constant 0 : i32
    %c0_i32_1 = arith.constant 0 : i32
    %c0_i32_2 = arith.constant 0 : i32
    return %c0_i32_0, %c0_i32_1, %2 : i32, i32, i32
  }
  func.func @transform_1(%arg0: i32, %arg1: i32) -> (i32, i32) {
    %c1_i32 = arith.constant 1 : i32
    %0 = arith.muli %arg0, %c1_i32 : i32
    %1 = arith.addi %0, %arg1 : i32
    %c0_i32 = arith.constant 0 : i32
    %2 = arith.minsi %1, %c0_i32 : i32
    %c0_i32_0 = arith.constant 0 : i32
    %c0_i32_1 = arith.constant 0 : i32
    return %c0_i32_0, %2 : i32, i32
  }
  func.func @transform_2(%arg0: i32, %arg1: i32) -> (i32, i32, i32) {
    %c0_i32 = arith.constant 0 : i32
    %c0_i32_0 = arith.constant 0 : i32
    %c0_i32_1 = arith.constant 0 : i32
    return %arg0, %c0_i32, %c0_i32_0 : i32, i32, i32
  }
  func.func @transform_3(%arg0: i32, %arg1: i32) -> (i32, i32, i32) {
    %c0_i32 = arith.constant 0 : i32
    %c0_i32_0 = arith.constant 0 : i32
    %c0_i32_1 = arith.constant 0 : i32
    return %arg0, %c0_i32, %c0_i32_0 : i32, i32, i32
  }
  func.func @transform_4(%arg0: i32, %arg1: i32) -> (i32, i32, i32) {
    %c0_i32 = arith.constant 0 : i32
    %c0_i32_0 = arith.constant 0 : i32
    %c0_i32_1 = arith.constant 0 : i32
    return %arg0, %c0_i32, %c0_i32_0 : i32, i32, i32
  }
}

</mosaic_0001>

<llo_original>
// kernel: tpu_custom_call.1
$region0: #{tpu_custom_call.1}
  #allocation0 [shape = 'u32[]', space=smem, size = 0x4, offset = 0x4, fixed_abs, tag = 'smem constant byte address 0x4 - core index']
  #allocation1 [shape = 'u32[144,128]{1,0:T(1,128)}', space=vmem, size = 0x12000, scoped, tag = 'internal scratch']
  %s0 = inlined_call_operand.vmem [shape: f32[2,7,256], index: 0, kind: input, shape index: {}]
  %s1 = inlined_call_operand.vmem [shape: s32[2,256], index: 1, kind: input, shape index: {}]
  %s2 = inlined_call_operand.hbm [shape: f32[1,2,7], index: 2, kind: output, shape index: {0}]
  %s3 = inlined_call_operand.hbm [shape: f32[1,2,7], index: 3, kind: output, shape index: {1}]
  %s4 = inlined_call_operand.hbm [shape: f32[1,1,1], index: 4, kind: output, shape index: {2}]
  %5 = xla_tuple %s2, %s3, %s4
  %s6 = sld [smem:[#allocation0]]
  $region38: #{tpu_custom_call.1} parent=0
    _
  %s8 = ssub.s32 1, %s6
  %s9 = scalar_select 0, %s8, %s6
  $region1: #{tpu_custom_call.1} parent=0
    #allocation2 [shape = 'u8[1024]{0}', space=vmem, size = 0x400, scoped, tag = 'output window, operand 0, single buffered']
    #allocation3 [shape = 's32[1]{0}', space=sflag, size = 0x4, scoped, tag = 'scoped memory for tpu_custom_call.1']
    #allocation4 [shape = 'u8[1024]{0}', space=vmem, size = 0x400, scoped, tag = 'output window, operand 1, single buffered']
    #allocation5 [shape = 's32[1]{0}', space=sflag, size = 0x4, scoped, tag = 'scoped memory for tpu_custom_call.1']
    #allocation6 [shape = 'u8[512]{0}', space=vmem, size = 0x400, scoped, tag = 'output window, operand 2, single buffered']
    %10 = vsyncpa [#allocation3], 0
    %11 = vsyncpa [#allocation5], 0
    // Predicated region
    $region2: #{tpu_custom_call.1} parent=1 // pred_check
      _
    $region3: #{tpu_custom_call.1} parent=1 // pred_check_branch
      %13 = sbr.rel (0) target = $region5
    $region4: #{tpu_custom_call.1} parent=1 // pred_region
      %s14 = sadd.s32 0, 0
      %p15 = scmp.lt.s32.totalorder %s14, 0
      %s16 = scalar_select %p15, %s14, 0
      %s17 = smul.u32 2, %s16
      %p18 = scmp.lt.s32.totalorder %s17, 1
      %s19 = scalar_select %p18, %s17, 1
      %s20 = smul.addr %s19, 8
      %s21 = scalar_lea.vmem %s0, %s20
      %s22 = sadd.s32 0, 0
      %p23 = scmp.lt.s32.totalorder %s22, 0
      %s24 = scalar_select %p23, %s22, 0
      %s25 = smul.u32 2, %s24
    $region5: #{tpu_custom_call.1} parent=1 // pred_fallthru
      _
    // Predicated region
    $region6: #{tpu_custom_call.1} parent=1 // pred_check
      _
    $region7: #{tpu_custom_call.1} parent=1 // pred_check_branch
      %27 = sbr.rel (0) target = $region9
    $region8: #{tpu_custom_call.1} parent=1 // pred_region
      %s28 = sadd.s32 0, 0
      %p29 = scmp.lt.s32.totalorder %s28, 0
      %s30 = scalar_select %p29, %s28, 0
      %s31 = smul.u32 2, %s30
      %p32 = scmp.lt.s32.totalorder %s31, 1
      %s33 = scalar_select %p32, %s31, 1
      %s34 = smul.addr %s33, 2
      %s35 = scalar_lea.vmem %s1, %s34
      %s36 = sadd.s32 0, 0
      %p37 = scmp.lt.s32.totalorder %s36, 0
      %s38 = scalar_select %p37, %s36, 0
      %s39 = smul.u32 2, %s38
    $region9: #{tpu_custom_call.1} parent=1 // pred_fallthru
      _
    %s40 = sadd.s32 0, 0
    %p41 = scmp.lt.s32.totalorder %s40, 0
    %s42 = scalar_select %p41, %s40, 0
    %s43 = smul.u32 2, %s42
    %p44 = scmp.lt.s32.totalorder %s43, 1
    %s45 = scalar_select %p44, %s43, 1
    %s46 = smul.addr %s45, 8
    %s47 = scalar_lea.vmem %s0, %s46
    %s48 = sadd.s32 0, 0
    %p49 = scmp.lt.s32.totalorder %s48, 0
    %s50 = scalar_select %p49, %s48, 0
    %s51 = smul.u32 2, %s50
    %p52 = scmp.lt.s32.totalorder %s51, 1
    %s53 = scalar_select %p52, %s51, 1
    %s54 = smul.addr %s53, 2
    %s55 = scalar_lea.vmem %s1, %s54
    %s56 = sadd.s32 0, 0
    %p57 = scmp.lt.s32.totalorder %s56, 0
    %s58 = scalar_select %p57, %s56, 0
    %s59 = smul.u32 2, %s58
    %p60 = scmp.lt.s32.totalorder %s59, 1
    %s61 = scalar_select %p60, %s59, 1
    %s62 = smul.addr %s61, 8
    %s63 = scalar_lea.vmem %s0, %s62
    %s64 = sadd.s32 0, 0
    %p65 = scmp.lt.s32.totalorder %s64, 0
    %s66 = scalar_select %p65, %s64, 0
    %s67 = smul.u32 2, %s66
    %s68 = sadd.s32 0, 0
    %p69 = scmp.lt.s32.totalorder %s68, 0
    %s70 = scalar_select %p69, %s68, 0
    %s71 = smul.u32 2, %s70
    %p72 = scmp.lt.s32.totalorder %s71, 1
    %s73 = scalar_select %p72, %s71, 1
    %s74 = smul.addr %s73, 2
    %s75 = scalar_lea.vmem %s1, %s74
    %s76 = sadd.s32 0, 0
    %p77 = scmp.lt.s32.totalorder %s76, 0
    %s78 = scalar_select %p77, %s76, 0
    %s79 = smul.u32 2, %s78
    %p80 = scmp.eq.s32.totalorder 0, 0
    // Predicated region
    $region10: #{tpu_custom_call.1} parent=1 // pred_check
      %p81 = pneg %p80
    $region11: #{tpu_custom_call.1} parent=1 // pred_check_branch
      %83 = sbr.rel (%p81) target = $region13
    $region12: #{tpu_custom_call.1} parent=1 // pred_region
      %vm84 = vcmask 50176
      %85 = vst.msk [vmem:[#allocation2] sm:$0x3] %vm84, 0.0
      %86 = vst.msk [vmem:[#allocation4] sm:$0x3] %vm84, 0.0
      %vm87 = vcmask 0
      %88 = vst.msk [vmem:[#allocation6] sm:$0x1] %vm87, 0.0
    $region13: #{tpu_custom_call.1} parent=1 // pred_fallthru
      _
    %v89 = vld [vmem:[%s63] sm:$0x7f]
    %v90 = vld [vmem:[%s63 + $0x8] sm:$0x7f]
    %v91 = vld [vmem:[%s63 + $0x10] sm:$0x7f]
    %v92 = vld [vmem:[%s63 + $0x18] sm:$0x7f]
    %v93 = vld [vmem:[%s75] sm:$0xf]
    %vm94 = vcmask 1046528
    %v95 = vsel %vm94, %v89, -inf
    %v96 = vrot.slane %v95, 4
    %v97 = vmax.f32 %v95, %v96
    %v98 = vrot.slane %v97, 2
    %v99 = vmax.f32 %v97, %v98
    %v100 = vrot.slane %v99, 1
    %v101 = vmax.f32 %v99, %v100
    %v102 = vsel %vm94, %v90, -inf
    %v103 = vrot.slane %v102, 4
    %v104 = vmax.f32 %v102, %v103
    %v105 = vrot.slane %v104, 2
    %v106 = vmax.f32 %v104, %v105
    %v107 = vrot.slane %v106, 1
    %v108 = vmax.f32 %v106, %v107
    %v109 = vsel %vm94, %v91, -inf
    %v110 = vrot.slane %v109, 4
    %v111 = vmax.f32 %v109, %v110
    %v112 = vrot.slane %v111, 2
    %v113 = vmax.f32 %v111, %v112
    %v114 = vrot.slane %v113, 1
    %v115 = vmax.f32 %v113, %v114
    %v116 = vsel %vm94, %v92, -inf
    %v117 = vrot.slane %v116, 4
    %v118 = vmax.f32 %v116, %v117
    %v119 = vrot.slane %v118, 2
    %v120 = vmax.f32 %v118, %v119
    %v121 = vrot.slane %v120, 1
    %v122 = vmax.f32 %v120, %v121
    %v123 = vsub.f32 %v89, %v101
    %v124 = vsub.f32 %v90, %v108
    %v125 = vsub.f32 %v91, %v115
    %v126 = vsub.f32 %v92, %v122
    %v127 = vmul.f32 %v123, 1.442695
    %v128 = vpow.pop %v127
    %v129 = vmul.f32 %v124, 1.442695
    %v130 = vpow.pop %v129
    %v131 = vmul.f32 %v125, 1.442695
    %v132 = vpow.pop %v131
    %v133 = vmul.f32 %v126, 1.442695
    %v134 = vpow.pop %v133
    %v135 = vsel %vm94, %v128, 0.0
    %v136 = vrot.slane %v135, 4
    %v137 = vadd.f32 %v135, %v136
    %v138 = vrot.slane %v137, 2
    %v139 = vadd.f32 %v137, %v138
    %v140 = vrot.slane %v139, 1
    %v141 = vadd.f32 %v139, %v140
    %v142 = vsel %vm94, %v130, 0.0
    %v143 = vrot.slane %v142, 4
    %v144 = vadd.f32 %v142, %v143
    %v145 = vrot.slane %v144, 2
    %v146 = vadd.f32 %v144, %v145
    %v147 = vrot.slane %v146, 1
    %v148 = vadd.f32 %v146, %v147
    %v149 = vsel %vm94, %v132, 0.0
    %v150 = vrot.slane %v149, 4
    %v151 = vadd.f32 %v149, %v150
    %v152 = vrot.slane %v151, 2
    %v153 = vadd.f32 %v151, %v152
    %v154 = vrot.slane %v153, 1
    %v155 = vadd.f32 %v153, %v154
    %v156 = vsel %vm94, %v134, 0.0
    %v157 = vrot.slane %v156, 4
    %v158 = vadd.f32 %v156, %v157
    %v159 = vrot.slane %v158, 2
    %v160 = vadd.f32 %v158, %v159
    %v161 = vrot.slane %v160, 1
    %v162 = vadd.f32 %v160, %v161
    %v163 = vrcp.pop %v141
    %v164 = vrcp.pop %v148
    %v165 = vrcp.pop %v155
    %v166 = vrcp.pop %v162
    %v167 = vmul.f32 %v128, %v163
    %v168 = vmul.f32 %v130, %v164
    %v169 = vmul.f32 %v132, %v165
    %v170 = vmul.f32 %v134, %v166
    %v171 = vlaneseq
    %v172 = vshrl.u32 %v171, 7
    %v174 = vunpack.c.l.s4 1966171168
    %v175 = vunpack.c.0.s8 %v174
    %v176 = vlaneseq
    %v177 = vshrl.u32 %v176, 7
    %v178 = vsub.s32 %v175, %v177
    %v179 = vrot.slane %v93, %v178
    %v180 = vcombine.high %v179, %v179
    %v181 = vlaneseq
    %v182 = vshrl.u32 %v181, 7
    %v183 = vsub.s32 0, %v182
    %v184 = vrot.slane %v179, %v183
    %v185 = vlaneseq
    %v186 = vshrl.u32 %v185, 7
    %v187 = vsub.s32 1, %v186
    %v188 = vrot.slane %v179, %v187
    %v189 = vlaneseq
    %v190 = vshrl.u32 %v189, 7
    %v191 = vsub.s32 0, %v190
    %v192 = vrot.slane %v180, %v191
    %v193 = vlaneseq
    %v194 = vshrl.u32 %v193, 7
    %v195 = vsub.s32 1, %v194
    %v196 = vrot.slane %v180, %v195
    %vm197 = vcmp.eq.s32.totalorder %v172, %v184
    %vm198 = vcmp.eq.s32.totalorder %v172, %v188
    %vm199 = vcmp.eq.s32.totalorder %v172, %v192
    %vm200 = vcmp.eq.s32.totalorder %v172, %v196
    %v201 = vsel %vm197, 1, 0
    %v202 = vsel %vm198, 1, 0
    %v203 = vsel %vm199, 1, 0
    %v204 = vsel %vm200, 1, 0
    %v205 = vcvt.s32.f32 %v201
    %v206 = vcvt.s32.f32 %v202
    %v207 = vcvt.s32.f32 %v203
    %v208 = vcvt.s32.f32 %v204
    %v209 = vlog2.pop %v141
    %v210 = vmul.f32 %v209, 0.6931472
    %v211 = vlog2.pop %v148
    %v212 = vmul.f32 %v211, 0.6931472
    %v213 = vlog2.pop %v155
    %v214 = vmul.f32 %v213, 0.6931472
    %v215 = vlog2.pop %v162
    %v216 = vmul.f32 %v215, 0.6931472
    %v217 = vmul.f32 %v205, %v123
    %v218 = vmul.f32 %v206, %v124
    %v219 = vmul.f32 %v207, %v125
    %v220 = vmul.f32 %v208, %v126
    %v221 = vsel %vm94, %v217, 0.0
    %v222 = vrot.slane %v221, 4
    %v223 = vadd.f32 %v221, %v222
    %v224 = vrot.slane %v223, 2
    %v225 = vadd.f32 %v223, %v224
    %v226 = vrot.slane %v225, 1
    %v227 = vadd.f32 %v225, %v226
    %v228 = vsel %vm94, %v218, 0.0
    %v229 = vrot.slane %v228, 4
    %v230 = vadd.f32 %v228, %v229
    %v231 = vrot.slane %v230, 2
    %v232 = vadd.f32 %v230, %v231
    %v233 = vrot.slane %v232, 1
    %v234 = vadd.f32 %v232, %v233
    %v235 = vsel %vm94, %v219, 0.0
    %v236 = vrot.slane %v235, 4
    %v237 = vadd.f32 %v235, %v236
    %v238 = vrot.slane %v237, 2
    %v239 = vadd.f32 %v237, %v238
    %v240 = vrot.slane %v239, 1
    %v241 = vadd.f32 %v239, %v240
    %v242 = vsel %vm94, %v220, 0.0
    %v243 = vrot.slane %v242, 4
    %v244 = vadd.f32 %v242, %v243
    %v245 = vrot.slane %v244, 2
    %v246 = vadd.f32 %v244, %v245
    %v247 = vrot.slane %v246, 1
    %v248 = vadd.f32 %v246, %v247
    %v249 = vsub.f32 %v210, %v227
    %v250 = vsub.f32 %v212, %v234
    %v251 = vsub.f32 %v214, %v241
    %v252 = vsub.f32 %v216, %v248
    %v253 = vmul.f32 %v205, %v167
    %v254 = vmul.f32 %v206, %v168
    %v255 = vmul.f32 %v207, %v169
    %v256 = vmul.f32 %v208, %v170
    %v257 = vmul.f32 %v167, %v167
    %v258 = vmul.f32 %v168, %v168
    %v259 = vmul.f32 %v169, %v169
    %v260 = vmul.f32 %v170, %v170
    %v261 = vadd.f32 %v257, %v205
    %v262 = vadd.f32 %v258, %v206
    %v263 = vadd.f32 %v259, %v207
    %v264 = vadd.f32 %v260, %v208
    %v265 = vld [vmem:[#allocation2] sm:$0x3]
    %v266 = vsel %vm94, %v253, 0.0
    %v267 = vsel %vm94, %v254, 0.0
    %v268 = vadd.f32 %v266, %v267
    %269 = vadd.xlane.f32.xlu0 %v268
    %v270 = vpop.xlane.xlu0 %269
    %v271 = vsel %vm94, %v255, 0.0
    %v272 = vsel %vm94, %v256, 0.0
    %v273 = vadd.f32 %v271, %v272
    %274 = vadd.xlane.f32.xlu0 %v273
    %v275 = vpop.xlane.xlu0 %274
    %v278 = vlaneseq
    %v279 = vand.u32 %v278, 127
    %v280 = vlaneseq
    %v281 = vshrl.u32 %v280, 7
    %v282 = vsub.s32 %v279, %v281
    %v283 = vrot.slane %v270, %v282
    %v284 = vlaneseq
    %v285 = vshrl.u32 %v284, 7
    %v286 = vsub.s32 %v279, %v285
    %v287 = vrot.slane %v275, %v286
    %vm288 = vcmask 1041409
    %v289 = vsel %vm288, %v287, %v283
    %v291 = vadd.f32 %v265, %v289
    %vm292 = vcmask 50176
    %293 = vst.msk [vmem:[#allocation2] sm:$0x3] %vm292, %v291
    %v294 = vld [vmem:[#allocation4] sm:$0x3]
    %v295 = vsel %vm94, %v261, 0.0
    %v296 = vsel %vm94, %v262, 0.0
    %v297 = vadd.f32 %v295, %v296
    %298 = vadd.xlane.f32.xlu0 %v297
    %v299 = vpop.xlane.xlu0 %298
    %v300 = vsel %vm94, %v263, 0.0
    %v301 = vsel %vm94, %v264, 0.0
    %v302 = vadd.f32 %v300, %v301
    %303 = vadd.xlane.f32.xlu0 %v302
    %v304 = vpop.xlane.xlu0 %303
    %v307 = vlaneseq
    %v308 = vshrl.u32 %v307, 7
    %v309 = vsub.s32 %v279, %v308
    %v310 = vrot.slane %v299, %v309
    %v311 = vlaneseq
    %v312 = vshrl.u32 %v311, 7
    %v313 = vsub.s32 %v279, %v312
    %v314 = vrot.slane %v304, %v313
    %v315 = vsel %vm288, %v314, %v310
    %v317 = vadd.f32 %v294, %v315
    %318 = vst.msk [vmem:[#allocation4] sm:$0x3] %vm292, %v317
    %v319 = vld [vmem:[#allocation6] sm:$0x1]
    %vm320 = vcmask 1040384
    %v321 = vsel %vm320, %v249, 0.0
    %v322 = vsel %vm320, %v250, 0.0
    %v323 = vadd.f32 %v321, %v322
    %v324 = vsel %vm320, %v251, 0.0
    %v325 = vadd.f32 %v323, %v324
    %v326 = vsel %vm320, %v252, 0.0
    %v327 = vadd.f32 %v325, %v326
    %328 = vadd.xlane.f32.xlu0 %v327
    %v329 = vpop.xlane.xlu0 %328
    %v330 = vrot.slane %v329, 4
    %v331 = vadd.f32 %v329, %v330
    %v332 = vrot.slane %v331, 2
    %v333 = vadd.f32 %v331, %v332
    %v334 = vrot.slane %v333, 1
    %v335 = vadd.f32 %v333, %v334
    %s336 = vtos %v335
    %v337 = vstv %s336
    %v338 = vadd.f32 %v319, %v337
    %vm339 = vcmask 0
    %340 = vst.msk [vmem:[#allocation6] sm:$0x1] %vm339, %v338
    // Predicated region
    $region14: #{tpu_custom_call.1} parent=1 // pred_check
      _
    $region15: #{tpu_custom_call.1} parent=1 // pred_check_branch
      %342 = sbr.rel (0) target = $region17
    $region16: #{tpu_custom_call.1} parent=1 // pred_region
      %s344 = ssub.s32 32, 32
      %345 = vsyncadd [#allocation3], %s344
      %s347 = sshll.u32 [#allocation2], 4
      %s348 = int_to_ptr.vmem [resolvable:$true] %s347
      %350 = dma.vmem_to_hbm [thread:$0]  %s348, 32, %s2, [#allocation3]
    $region17: #{tpu_custom_call.1} parent=1 // pred_fallthru
      _
    // Predicated region
    $region18: #{tpu_custom_call.1} parent=1 // pred_check
      _
    $region19: #{tpu_custom_call.1} parent=1 // pred_check_branch
      %352 = sbr.rel (0) target = $region21
    $region20: #{tpu_custom_call.1} parent=1 // pred_region
      %s354 = ssub.s32 32, 32
      %355 = vsyncadd [#allocation5], %s354
      %s357 = sshll.u32 [#allocation4], 4
      %s358 = int_to_ptr.vmem [resolvable:$true] %s357
      %360 = dma.vmem_to_hbm [thread:$0]  %s358, 32, %s3, [#allocation5]
    $region21: #{tpu_custom_call.1} parent=1 // pred_fallthru
      _
    // Predicated region
    $region22: #{tpu_custom_call.1} parent=1 // pred_check
      _
    $region23: #{tpu_custom_call.1} parent=1 // pred_check_branch
      %362 = sbr.rel (0) target = $region25
    $region24: #{tpu_custom_call.1} parent=1 // pred_region
      %s364 = ssub.s32 16, 16
      %365 = vsyncadd [#allocation5], %s364
      %s367 = sshll.u32 [#allocation6], 4
      %s368 = int_to_ptr.vmem [resolvable:$true] %s367
      %370 = dma.vmem_to_hbm [thread:$0]  %s368, 16, %s4, [#allocation5]
    $region25: #{tpu_custom_call.1} parent=1 // pred_fallthru
      _
    // Predicated region
    $region26: #{tpu_custom_call.1} parent=1 // pred_check
      _
    $region27: #{tpu_custom_call.1} parent=1 // pred_check_branch
      %372 = sbr.rel (0) target = $region29
    $region28: #{tpu_custom_call.1} parent=1 // pred_region
      %373 = dma.done [#allocation3], 32
    $region29: #{tpu_custom_call.1} parent=1 // pred_fallthru
      _
    // Predicated region
    $region30: #{tpu_custom_call.1} parent=1 // pred_check
      _
    $region31: #{tpu_custom_call.1} parent=1 // pred_check_branch
      %375 = sbr.rel (0) target = $region33
    $region32: #{tpu_custom_call.1} parent=1 // pred_region
      %376 = dma.done [#allocation5], 32
    $region33: #{tpu_custom_call.1} parent=1 // pred_fallthru
      _
    // Predicated region
    $region34: #{tpu_custom_call.1} parent=1 // pred_check
      _
    $region35: #{tpu_custom_call.1} parent=1 // pred_check_branch
      %378 = sbr.rel (0) target = $region37
    $region36: #{tpu_custom_call.1} parent=1 // pred_region
      %379 = dma.done [#allocation5], 16
    $region37: #{tpu_custom_call.1} parent=1 // pred_fallthru
      _
    %380 = vsyncpa [#allocation3], 1
    %381 = vsyncpa [#allocation5], 1

</llo_original>
